<compile_context>
chip_gen: v7x
topology: tpu7x:2x2x1
jax: 0.10.0
libtpu: 0.0.40
codegen_flags: <defaults>
</compile_context>

<pallas_src>
from functools import partial

import jax
import jax.numpy as jnp
from jax.experimental import pallas as pl
from jax.experimental.pallas import tpu as pltpu

EPS = 1e-5


def tiny_event_adaptor_kernel(x_ref, par_ref, o_ref, *, N, C, H, W,
                              use_residual):
    # x_ref  : (N*C, H*W)  input, NCHW ravel order; spatial axis on lanes,
    #                      (n, c) folded onto sublanes (fully dense vregs).
    # par_ref: (N*C, 9 + N*C + 4) packed per-row parameter columns:
    #            cols 0..8          depthwise tap k = (dh+1)*3 + (dw+1)
    #            cols 9..9+NC-1     pointwise: col 9+j = weight of source row j
    #                               into each destination row (block-diagonal)
    #            cols 9+NC..9+NC+3  g1, b1, g2, b2
    # o_ref  : (N*C, H*W)  output, same layout as x_ref.
    NC, HW = x_ref.shape
    inv_m = 1.0 / float(N * HW)            # 1 / (elements per channel)
    IPW = 9
    IG1, IB1, IG2, IB2 = 9 + NC, 10 + NC, 11 + NC, 12 + NC

    def wcol(k):                           # (NC, 1) per-row weight column
        return par_ref[:, k:k + 1]

    x = x_ref[...]

    # Flat spatial index along lanes (broadcasts over the NC sublane rows).
    p_idx = jax.lax.broadcasted_iota(jnp.int32, (1, HW), 1)
    w_idx = (p_idx & (W - 1)) if ((W & (W - 1)) == 0) else (p_idx % W)

    # Column masks are applied to the roll *sources* (kills W-direction wrap).
    xz_r = jnp.where(w_idx != W - 1, x, 0.0)     # source for dw = -1 taps
    xz_l = jnp.where(w_idx != 0, x, 0.0)         # source for dw = +1 taps
    # Row masks are applied to the *destination*, once per dh group.
    ok_top = p_idx >= W                          # dh = -1 needs h >= 1
    ok_bot = p_idx < (H - 1) * W                 # dh = +1 needs h <= H-2

    # ---- depthwise 3x3: 8 in-register lane rolls (XLU) + 9 per-row FMAs ----
    acc = None
    for dh in (-1, 0, 1):
        grp = None
        for dw in (-1, 0, 1):
            src = x if dw == 0 else (xz_r if dw == -1 else xz_l)
            off = dh * W + dw                    # result[p] needs src[p + off]
            t = src if off == 0 else pltpu.roll(src, shift=(-off) % HW, axis=1)
            term = t * wcol((dh + 1) * 3 + (dw + 1))
            grp = term if grp is None else grp + term
        if dh == -1:
            grp = jnp.where(ok_top, grp, 0.0)
        elif dh == 1:
            grp = jnp.where(ok_bot, grp, 0.0)
        acc = grp if acc is None else acc + grp

    # ---- training-mode BatchNorm (batch mean / biased var, fused sum+sumsq) -
    def batchnorm(y, g_col, b_col):
        ysq = y * y
        ys, qs = y, ysq
        for kk in range(1, N):         # combine the N folded per-sample groups
            ys = ys + pltpu.roll(y, shift=kk * C, axis=0)
            qs = qs + pltpu.roll(ysq, shift=kk * C, axis=0)
        mu = jnp.sum(ys, axis=1, keepdims=True) * inv_m            # (NC, 1)
        var = jnp.maximum(jnp.sum(qs, axis=1, keepdims=True) * inv_m
                          - mu * mu, 0.0)        # clamp single-pass variance
        return (y - mu) * (jax.lax.rsqrt(var + EPS) * g_col) + b_col

    h1 = jnp.maximum(batchnorm(acc, wcol(IG1), wcol(IB1)), 0.0)

    # ---- pointwise 1x1: NC sublane-broadcast FMAs with host-precomputed
    # block-diagonal weight columns (C=4 is far too small for the MXU).
    pw = None
    for j in range(NC):
        term = h1[j:j + 1, :] * wcol(IPW + j)    # (1,HW) * (NC,1) -> (NC,HW)
        pw = term if pw is None else pw + term

    # ---- BatchNorm #2 + residual + ReLU, lane-dense store ------------------
    out = batchnorm(pw, wcol(IG2), wcol(IB2))
    if use_residual:
        out = out + x
    o_ref[...] = jnp.maximum(out, 0.0)


def pack_params(params, N):
    """Pack (wd, wp, g1, b1, g2, b2) into one (N*C, 9 + N*C + 4) f32 array."""
    wd, wp, g1, b1, g2, b2 = params
    C = wp.shape[0]
    c_of = jnp.tile(jnp.arange(C), N)            # channel of each folded row
    n_of = jnp.repeat(jnp.arange(N), C)          # batch index of each row
    # depthwise taps: col k holds wd[k//3, k%3, c(row)] for every row
    dw_block = wd.reshape(9, C)[:, c_of].T                          # (NC, 9)
    # pointwise 1x1 as block-diagonal columns: col j holds, for each
    # destination row r, wp[c(j), c(r)] if n(j) == n(r) else 0.
    same_n = (n_of[:, None] == n_of[None, :]).astype(jnp.float32)
    pw_block = wp[c_of[None, :], c_of[:, None]] * same_n            # (NC, NC)
    bn_block = jnp.stack([g1.reshape(-1)[c_of], b1.reshape(-1)[c_of],
                          g2.reshape(-1)[c_of], b2.reshape(-1)[c_of]],
                         axis=1)                                    # (NC, 4)
    return jnp.concatenate([dw_block, pw_block, bn_block],
                           axis=1).astype(jnp.float32)


@partial(jax.jit, static_argnames=("use_residual",))
def tiny_event_adaptor(x_nchw, params, use_residual=True):
    """Forward pass of TinyEventAdaptor. x_nchw: (N, C, H, W) float32."""
    N, C, H, W = x_nchw.shape
    HW = H * W
    xf = x_nchw.reshape(N * C, HW).astype(jnp.float32)      # free reshape
    par = pack_params(params, N)                             # one 4 KiB tile

    # TODO(synk): at N=2,C=4,16x16 this kernel is launch/DMA-latency bound
    # (~16 KiB HBM, ~100 KFLOPs).  To move wall clock, batch many adaptor
    # instances (or a larger N) behind one pallas_call with a leading grid
    # axis marked "parallel" (uses both v7x TensorCores) plus a cross-tile
    # two-pass / partial-sum scheme for the batch-stat BNs, or fuse the
    # adaptor into the adjacent kernel.  Single-block VMEM here is ~20 KiB,
    # far below even v7x's 32 MiB scoped default.
    kernel = partial(tiny_event_adaptor_kernel, N=N, C=C, H=H, W=W,
                     use_residual=use_residual)
    vmem = lambda: pl.BlockSpec(memory_space=pltpu.MemorySpace.VMEM)
    out = pl.pallas_call(
        kernel,
        out_shape=jax.ShapeDtypeStruct((N * C, HW), jnp.float32),
        in_specs=[vmem(), vmem()],
        out_specs=vmem(),
    )(xf, par)
    return out.reshape(N, C, H, W)                           # free reshape


def init_params(key, C):
    """Deterministic He (fan_out) init matching the module's __init__ shapes."""
    kd, kp = jax.random.split(key)
    # depthwise conv weight: torch (C, 1, 3, 3) -> layout (3, 3, C)
    std_d = (2.0 / (C * 3 * 3)) ** 0.5
    wd = std_d * jax.random.normal(kd, (3, 3, C), jnp.float32)
    # pointwise conv weight: torch (C_out, C_in, 1, 1) -> layout (C_in, C_out)
    std_p = (2.0 / C) ** 0.5
    wp = std_p * jax.random.normal(kp, (C, C), jnp.float32)
    g1 = jnp.ones((1, C), jnp.float32)
    b1 = jnp.zeros((1, C), jnp.float32)
    g2 = jnp.ones((1, C), jnp.float32)
    b2 = jnp.zeros((1, C), jnp.float32)
    return wd, wp, g1, b1, g2, b2


def reference_forward(x_nchw, params, use_residual=True):
    """Pure-JAX reference (same semantics as the PyTorch forward in train mode)."""
    wd, wp, g1, b1, g2, b2 = params
    C = x_nchw.shape[1]

    def bn(y, g, b):
        mu = jnp.mean(y, axis=(0, 2, 3), keepdims=True)
        var = jnp.mean((y - mu) ** 2, axis=(0, 2, 3), keepdims=True)
        return (y - mu) * jax.lax.rsqrt(var + EPS) * g.reshape(1, C, 1, 1) \
               + b.reshape(1, C, 1, 1)

    wd_t = jnp.transpose(wd, (2, 0, 1))[:, None, :, :]        # (C,1,3,3)
    dw = jax.lax.conv_general_dilated(
        x_nchw, wd_t, (1, 1), ((1, 1), (1, 1)),
        dimension_numbers=('NCHW', 'OIHW', 'NCHW'), feature_group_count=C)
    h = jax.nn.relu(bn(dw, g1, b1))
    wp_t = jnp.transpose(wp)[:, :, None, None]                # (Cout,Cin,1,1)
    pw = jax.lax.conv_general_dilated(
        h, wp_t, (1, 1), 'VALID',
        dimension_numbers=('NCHW', 'OIHW', 'NCHW'))
    out = bn(pw, g2, b2)
    if use_residual:
        out = out + x_nchw
    return jax.nn.relu(out)


if __name__ == "__main__":
    key = jax.random.PRNGKey(0)
    kx, kw = jax.random.split(key)

    N, C, H, W = 2, 4, 16, 16          # small shapes consistent with the module
    x = jax.random.normal(kx, (N, C, H, W), jnp.float32)
    params = init_params(kw, C)

    out = tiny_event_adaptor(x, params, use_residual=True)
    out = jax.block_until_ready(out)
    assert out.shape == (N, C, H, W) and out.dtype == jnp.float32

    ref = reference_forward(x, params, use_residual=True)
    assert jnp.allclose(out, ref, atol=1e-4, rtol=1e-4), "kernel != reference"

    print("KERNEL_OK")
</pallas_src>

<mosaic_0001>
module attributes {stable_mosaic.version = 11 : i64} {
  func.func @tiny_event_adaptor_kernel(%arg0: memref<8x256xf32, #tpu.memory_space<vmem>>, %arg1: memref<8x21xf32, #tpu.memory_space<vmem>>, %arg2: memref<8x256xf32, #tpu.memory_space<vmem>>) attributes {dimension_semantics = [], scalar_prefetch = 0 : i64, scratch_operands = 0 : i64, tpu.core_type = #tpu.core_type<tc>} {
    %c0 = arith.constant 0 : index
    %c0_0 = arith.constant 0 : index
    %0 = vector.load %arg0[%c0, %c0_0] : memref<8x256xf32, #tpu.memory_space<vmem>>, vector<8x256xf32>
    %1 = tpu.iota {dimensions = array<i32: 1>} : vector<1x256xi32>
    %c15_i32 = arith.constant 15 : i32
    %2 = vector.broadcast %c15_i32 : i32 to vector<1x256xi32>
    %3 = arith.andi %1, %2 : vector<1x256xi32>
    %c15_i32_1 = arith.constant 15 : i32
    %4 = vector.broadcast %c15_i32_1 : i32 to vector<1x256xi32>
    %5 = arith.cmpi ne, %3, %4 : vector<1x256xi32>
    %cst = arith.constant 0.000000e+00 : f32
    %6 = vector.shape_cast %5 : vector<1x256xi1> to vector<1x256xi1>
    %7 = vector.broadcast %6 : vector<1x256xi1> to vector<8x256xi1>
    %8 = vector.broadcast %cst : f32 to vector<8x256xf32>
    %9 = arith.select %7, %0, %8 : vector<8x256xi1>, vector<8x256xf32>
    %c0_i32 = arith.constant 0 : i32
    %10 = vector.broadcast %c0_i32 : i32 to vector<1x256xi32>
    %11 = arith.cmpi ne, %3, %10 : vector<1x256xi32>
    %cst_2 = arith.constant 0.000000e+00 : f32
    %12 = vector.shape_cast %11 : vector<1x256xi1> to vector<1x256xi1>
    %13 = vector.broadcast %12 : vector<1x256xi1> to vector<8x256xi1>
    %14 = vector.broadcast %cst_2 : f32 to vector<8x256xf32>
    %15 = arith.select %13, %0, %14 : vector<8x256xi1>, vector<8x256xf32>
    %c16_i32 = arith.constant 16 : i32
    %16 = vector.broadcast %c16_i32 : i32 to vector<1x256xi32>
    %17 = arith.cmpi sge, %1, %16 : vector<1x256xi32>
    %c240_i32 = arith.constant 240 : i32
    %18 = vector.broadcast %c240_i32 : i32 to vector<1x256xi32>
    %19 = arith.cmpi slt, %1, %18 : vector<1x256xi32>
    %c17_i32 = arith.constant 17 : i32
    %20 = tpu.dynamic_rotate %9 by %c17_i32 dim 1 : vector<8x256xf32>, i32 -> vector<8x256xf32>
    %c0_3 = arith.constant 0 : index
    %c0_4 = arith.constant 0 : index
    %21 = vector.load %arg1[%c0_3, %c0_4] : memref<8x21xf32, #tpu.memory_space<vmem>>, vector<8x1xf32>
    %22 = vector.broadcast %21 : vector<8x1xf32> to vector<8x256xf32>
    %23 = arith.mulf %20, %22 : vector<8x256xf32>
    %c16_i32_5 = arith.constant 16 : i32
    %24 = tpu.dynamic_rotate %0 by %c16_i32_5 dim 1 : vector<8x256xf32>, i32 -> vector<8x256xf32>
    %c0_6 = arith.constant 0 : index
    %c1 = arith.constant 1 : index
    %25 = vector.load %arg1[%c0_6, %c1] : memref<8x21xf32, #tpu.memory_space<vmem>>, vector<8x1xf32>
    %26 = vector.broadcast %25 : vector<8x1xf32> to vector<8x256xf32>
    %27 = arith.mulf %24, %26 : vector<8x256xf32>
    %28 = arith.addf %23, %27 : vector<8x256xf32>
    %c15_i32_7 = arith.constant 15 : i32
    %29 = tpu.dynamic_rotate %15 by %c15_i32_7 dim 1 : vector<8x256xf32>, i32 -> vector<8x256xf32>
    %c0_8 = arith.constant 0 : index
    %c2 = arith.constant 2 : index
    %30 = vector.load %arg1[%c0_8, %c2] : memref<8x21xf32, #tpu.memory_space<vmem>>, vector<8x1xf32>
    %31 = vector.broadcast %30 : vector<8x1xf32> to vector<8x256xf32>
    %32 = arith.mulf %29, %31 : vector<8x256xf32>
    %33 = arith.addf %28, %32 : vector<8x256xf32>
    %cst_9 = arith.constant 0.000000e+00 : f32
    %34 = vector.shape_cast %17 : vector<1x256xi1> to vector<1x256xi1>
    %35 = vector.broadcast %34 : vector<1x256xi1> to vector<8x256xi1>
    %36 = vector.broadcast %cst_9 : f32 to vector<8x256xf32>
    %37 = arith.select %35, %33, %36 : vector<8x256xi1>, vector<8x256xf32>
    %c1_i32 = arith.constant 1 : i32
    %38 = tpu.dynamic_rotate %9 by %c1_i32 dim 1 : vector<8x256xf32>, i32 -> vector<8x256xf32>
    %c0_10 = arith.constant 0 : index
    %c3 = arith.constant 3 : index
    %39 = vector.load %arg1[%c0_10, %c3] : memref<8x21xf32, #tpu.memory_space<vmem>>, vector<8x1xf32>
    %40 = vector.broadcast %39 : vector<8x1xf32> to vector<8x256xf32>
    %41 = arith.mulf %38, %40 : vector<8x256xf32>
    %c0_11 = arith.constant 0 : index
    %c4 = arith.constant 4 : index
    %42 = vector.load %arg1[%c0_11, %c4] : memref<8x21xf32, #tpu.memory_space<vmem>>, vector<8x1xf32>
    %43 = vector.broadcast %42 : vector<8x1xf32> to vector<8x256xf32>
    %44 = arith.mulf %0, %43 : vector<8x256xf32>
    %45 = arith.addf %41, %44 : vector<8x256xf32>
    %c255_i32 = arith.constant 255 : i32
    %46 = tpu.dynamic_rotate %15 by %c255_i32 dim 1 : vector<8x256xf32>, i32 -> vector<8x256xf32>
    %c0_12 = arith.constant 0 : index
    %c5 = arith.constant 5 : index
    %47 = vector.load %arg1[%c0_12, %c5] : memref<8x21xf32, #tpu.memory_space<vmem>>, vector<8x1xf32>
    %48 = vector.broadcast %47 : vector<8x1xf32> to vector<8x256xf32>
    %49 = arith.mulf %46, %48 : vector<8x256xf32>
    %50 = arith.addf %45, %49 : vector<8x256xf32>
    %51 = arith.addf %37, %50 : vector<8x256xf32>
    %c241_i32 = arith.constant 241 : i32
    %52 = tpu.dynamic_rotate %9 by %c241_i32 dim 1 : vector<8x256xf32>, i32 -> vector<8x256xf32>
    %c0_13 = arith.constant 0 : index
    %c6 = arith.constant 6 : index
    %53 = vector.load %arg1[%c0_13, %c6] : memref<8x21xf32, #tpu.memory_space<vmem>>, vector<8x1xf32>
    %54 = vector.broadcast %53 : vector<8x1xf32> to vector<8x256xf32>
    %55 = arith.mulf %52, %54 : vector<8x256xf32>
    %c240_i32_14 = arith.constant 240 : i32
    %56 = tpu.dynamic_rotate %0 by %c240_i32_14 dim 1 : vector<8x256xf32>, i32 -> vector<8x256xf32>
    %c0_15 = arith.constant 0 : index
    %c7 = arith.constant 7 : index
    %57 = vector.load %arg1[%c0_15, %c7] : memref<8x21xf32, #tpu.memory_space<vmem>>, vector<8x1xf32>
    %58 = vector.broadcast %57 : vector<8x1xf32> to vector<8x256xf32>
    %59 = arith.mulf %56, %58 : vector<8x256xf32>
    %60 = arith.addf %55, %59 : vector<8x256xf32>
    %c239_i32 = arith.constant 239 : i32
    %61 = tpu.dynamic_rotate %15 by %c239_i32 dim 1 : vector<8x256xf32>, i32 -> vector<8x256xf32>
    %c0_16 = arith.constant 0 : index
    %c8 = arith.constant 8 : index
    %62 = vector.load %arg1[%c0_16, %c8] : memref<8x21xf32, #tpu.memory_space<vmem>>, vector<8x1xf32>
    %63 = vector.broadcast %62 : vector<8x1xf32> to vector<8x256xf32>
    %64 = arith.mulf %61, %63 : vector<8x256xf32>
    %65 = arith.addf %60, %64 : vector<8x256xf32>
    %cst_17 = arith.constant 0.000000e+00 : f32
    %66 = vector.shape_cast %19 : vector<1x256xi1> to vector<1x256xi1>
    %67 = vector.broadcast %66 : vector<1x256xi1> to vector<8x256xi1>
    %68 = vector.broadcast %cst_17 : f32 to vector<8x256xf32>
    %69 = arith.select %67, %65, %68 : vector<8x256xi1>, vector<8x256xf32>
    %70 = arith.addf %51, %69 : vector<8x256xf32>
    %c0_18 = arith.constant 0 : index
    %c17 = arith.constant 17 : index
    %71 = vector.load %arg1[%c0_18, %c17] : memref<8x21xf32, #tpu.memory_space<vmem>>, vector<8x1xf32>
    %c0_19 = arith.constant 0 : index
    %c18 = arith.constant 18 : index
    %72 = vector.load %arg1[%c0_19, %c18] : memref<8x21xf32, #tpu.memory_space<vmem>>, vector<8x1xf32>
    %73 = arith.mulf %70, %70 : vector<8x256xf32>
    %c4_i32 = arith.constant 4 : i32
    %74 = tpu.dynamic_rotate %70 by %c4_i32 dim 0 : vector<8x256xf32>, i32 -> vector<8x256xf32>
    %75 = arith.addf %70, %74 : vector<8x256xf32>
    %c4_i32_20 = arith.constant 4 : i32
    %76 = tpu.dynamic_rotate %73 by %c4_i32_20 dim 0 : vector<8x256xf32>, i32 -> vector<8x256xf32>
    %77 = arith.addf %73, %76 : vector<8x256xf32>
    %cst_21 = arith.constant dense<0.000000e+00> : vector<8xf32>
    %78 = vector.multi_reduction <add>, %75, %cst_21 [1] : vector<8x256xf32> to vector<8xf32>
    %79 = vector.shape_cast %78 : vector<8xf32> to vector<8x1xf32>
    %cst_22 = arith.constant 0.001953125 : f32
    %80 = vector.broadcast %cst_22 : f32 to vector<8x1xf32>
    %81 = arith.mulf %79, %80 : vector<8x1xf32>
    %cst_23 = arith.constant dense<0.000000e+00> : vector<8xf32>
    %82 = vector.multi_reduction <add>, %77, %cst_23 [1] : vector<8x256xf32> to vector<8xf32>
    %83 = vector.shape_cast %82 : vector<8xf32> to vector<8x1xf32>
    %cst_24 = arith.constant 0.001953125 : f32
    %84 = vector.broadcast %cst_24 : f32 to vector<8x1xf32>
    %85 = arith.mulf %83, %84 : vector<8x1xf32>
    %86 = arith.mulf %81, %81 : vector<8x1xf32>
    %87 = arith.subf %85, %86 : vector<8x1xf32>
    %cst_25 = arith.constant 0.000000e+00 : f32
    %88 = vector.broadcast %cst_25 : f32 to vector<8x1xf32>
    %89 = arith.maximumf %87, %88 : vector<8x1xf32>
    %90 = vector.broadcast %81 : vector<8x1xf32> to vector<8x256xf32>
    %91 = arith.subf %70, %90 : vector<8x256xf32>
    %cst_26 = arith.constant 9.99999974E-6 : f32
    %92 = vector.broadcast %cst_26 : f32 to vector<8x1xf32>
    %93 = arith.addf %89, %92 : vector<8x1xf32>
    %94 = math.rsqrt %93 : vector<8x1xf32>
    %95 = arith.mulf %94, %71 : vector<8x1xf32>
    %96 = vector.broadcast %95 : vector<8x1xf32> to vector<8x256xf32>
    %97 = arith.mulf %91, %96 : vector<8x256xf32>
    %98 = vector.broadcast %72 : vector<8x1xf32> to vector<8x256xf32>
    %99 = arith.addf %97, %98 : vector<8x256xf32>
    %cst_27 = arith.constant 0.000000e+00 : f32
    %100 = vector.broadcast %cst_27 : f32 to vector<8x256xf32>
    %101 = arith.maximumf %99, %100 : vector<8x256xf32>
    %102 = vector.extract_strided_slice %101 {offsets = [0, 0], sizes = [1, 256], strides = [1, 1]} : vector<8x256xf32> to vector<1x256xf32>
    %c0_28 = arith.constant 0 : index
    %c9 = arith.constant 9 : index
    %103 = vector.load %arg1[%c0_28, %c9] : memref<8x21xf32, #tpu.memory_space<vmem>>, vector<8x1xf32>
    %104 = vector.broadcast %102 : vector<1x256xf32> to vector<8x256xf32>
    %105 = vector.broadcast %103 : vector<8x1xf32> to vector<8x256xf32>
    %106 = arith.mulf %104, %105 : vector<8x256xf32>
    %107 = vector.extract_strided_slice %101 {offsets = [1, 0], sizes = [1, 256], strides = [1, 1]} : vector<8x256xf32> to vector<1x256xf32>
    %c0_29 = arith.constant 0 : index
    %c10 = arith.constant 10 : index
    %108 = vector.load %arg1[%c0_29, %c10] : memref<8x21xf32, #tpu.memory_space<vmem>>, vector<8x1xf32>
    %109 = vector.broadcast %107 : vector<1x256xf32> to vector<8x256xf32>
    %110 = vector.broadcast %108 : vector<8x1xf32> to vector<8x256xf32>
    %111 = arith.mulf %109, %110 : vector<8x256xf32>
    %112 = arith.addf %106, %111 : vector<8x256xf32>
    %113 = vector.extract_strided_slice %101 {offsets = [2, 0], sizes = [1, 256], strides = [1, 1]} : vector<8x256xf32> to vector<1x256xf32>
    %c0_30 = arith.constant 0 : index
    %c11 = arith.constant 11 : index
    %114 = vector.load %arg1[%c0_30, %c11] : memref<8x21xf32, #tpu.memory_space<vmem>>, vector<8x1xf32>
    %115 = vector.broadcast %113 : vector<1x256xf32> to vector<8x256xf32>
    %116 = vector.broadcast %114 : vector<8x1xf32> to vector<8x256xf32>
    %117 = arith.mulf %115, %116 : vector<8x256xf32>
    %118 = arith.addf %112, %117 : vector<8x256xf32>
    %119 = vector.extract_strided_slice %101 {offsets = [3, 0], sizes = [1, 256], strides = [1, 1]} : vector<8x256xf32> to vector<1x256xf32>
    %c0_31 = arith.constant 0 : index
    %c12 = arith.constant 12 : index
    %120 = vector.load %arg1[%c0_31, %c12] : memref<8x21xf32, #tpu.memory_space<vmem>>, vector<8x1xf32>
    %121 = vector.broadcast %119 : vector<1x256xf32> to vector<8x256xf32>
    %122 = vector.broadcast %120 : vector<8x1xf32> to vector<8x256xf32>
    %123 = arith.mulf %121, %122 : vector<8x256xf32>
    %124 = arith.addf %118, %123 : vector<8x256xf32>
    %125 = vector.extract_strided_slice %101 {offsets = [4, 0], sizes = [1, 256], strides = [1, 1]} : vector<8x256xf32> to vector<1x256xf32>
    %c0_32 = arith.constant 0 : index
    %c13 = arith.constant 13 : index
    %126 = vector.load %arg1[%c0_32, %c13] : memref<8x21xf32, #tpu.memory_space<vmem>>, vector<8x1xf32>
    %127 = vector.broadcast %125 : vector<1x256xf32> to vector<8x256xf32>
    %128 = vector.broadcast %126 : vector<8x1xf32> to vector<8x256xf32>
    %129 = arith.mulf %127, %128 : vector<8x256xf32>
    %130 = arith.addf %124, %129 : vector<8x256xf32>
    %131 = vector.extract_strided_slice %101 {offsets = [5, 0], sizes = [1, 256], strides = [1, 1]} : vector<8x256xf32> to vector<1x256xf32>
    %c0_33 = arith.constant 0 : index
    %c14 = arith.constant 14 : index
    %132 = vector.load %arg1[%c0_33, %c14] : memref<8x21xf32, #tpu.memory_space<vmem>>, vector<8x1xf32>
    %133 = vector.broadcast %131 : vector<1x256xf32> to vector<8x256xf32>
    %134 = vector.broadcast %132 : vector<8x1xf32> to vector<8x256xf32>
    %135 = arith.mulf %133, %134 : vector<8x256xf32>
    %136 = arith.addf %130, %135 : vector<8x256xf32>
    %137 = vector.extract_strided_slice %101 {offsets = [6, 0], sizes = [1, 256], strides = [1, 1]} : vector<8x256xf32> to vector<1x256xf32>
    %c0_34 = arith.constant 0 : index
    %c15 = arith.constant 15 : index
    %138 = vector.load %arg1[%c0_34, %c15] : memref<8x21xf32, #tpu.memory_space<vmem>>, vector<8x1xf32>
    %139 = vector.broadcast %137 : vector<1x256xf32> to vector<8x256xf32>
    %140 = vector.broadcast %138 : vector<8x1xf32> to vector<8x256xf32>
    %141 = arith.mulf %139, %140 : vector<8x256xf32>
    %142 = arith.addf %136, %141 : vector<8x256xf32>
    %143 = vector.extract_strided_slice %101 {offsets = [7, 0], sizes = [1, 256], strides = [1, 1]} : vector<8x256xf32> to vector<1x256xf32>
    %c0_35 = arith.constant 0 : index
    %c16 = arith.constant 16 : index
    %144 = vector.load %arg1[%c0_35, %c16] : memref<8x21xf32, #tpu.memory_space<vmem>>, vector<8x1xf32>
    %145 = vector.broadcast %143 : vector<1x256xf32> to vector<8x256xf32>
    %146 = vector.broadcast %144 : vector<8x1xf32> to vector<8x256xf32>
    %147 = arith.mulf %145, %146 : vector<8x256xf32>
    %148 = arith.addf %142, %147 : vector<8x256xf32>
    %c0_36 = arith.constant 0 : index
    %c19 = arith.constant 19 : index
    %149 = vector.load %arg1[%c0_36, %c19] : memref<8x21xf32, #tpu.memory_space<vmem>>, vector<8x1xf32>
    %c0_37 = arith.constant 0 : index
    %c20 = arith.constant 20 : index
    %150 = vector.load %arg1[%c0_37, %c20] : memref<8x21xf32, #tpu.memory_space<vmem>>, vector<8x1xf32>
    %151 = arith.mulf %148, %148 : vector<8x256xf32>
    %c4_i32_38 = arith.constant 4 : i32
    %152 = tpu.dynamic_rotate %148 by %c4_i32_38 dim 0 : vector<8x256xf32>, i32 -> vector<8x256xf32>
    %153 = arith.addf %148, %152 : vector<8x256xf32>
    %c4_i32_39 = arith.constant 4 : i32
    %154 = tpu.dynamic_rotate %151 by %c4_i32_39 dim 0 : vector<8x256xf32>, i32 -> vector<8x256xf32>
    %155 = arith.addf %151, %154 : vector<8x256xf32>
    %cst_40 = arith.constant dense<0.000000e+00> : vector<8xf32>
    %156 = vector.multi_reduction <add>, %153, %cst_40 [1] : vector<8x256xf32> to vector<8xf32>
    %157 = vector.shape_cast %156 : vector<8xf32> to vector<8x1xf32>
    %cst_41 = arith.constant 0.001953125 : f32
    %158 = vector.broadcast %cst_41 : f32 to vector<8x1xf32>
    %159 = arith.mulf %157, %158 : vector<8x1xf32>
    %cst_42 = arith.constant dense<0.000000e+00> : vector<8xf32>
    %160 = vector.multi_reduction <add>, %155, %cst_42 [1] : vector<8x256xf32> to vector<8xf32>
    %161 = vector.shape_cast %160 : vector<8xf32> to vector<8x1xf32>
    %cst_43 = arith.constant 0.001953125 : f32
    %162 = vector.broadcast %cst_43 : f32 to vector<8x1xf32>
    %163 = arith.mulf %161, %162 : vector<8x1xf32>
    %164 = arith.mulf %159, %159 : vector<8x1xf32>
    %165 = arith.subf %163, %164 : vector<8x1xf32>
    %cst_44 = arith.constant 0.000000e+00 : f32
    %166 = vector.broadcast %cst_44 : f32 to vector<8x1xf32>
    %167 = arith.maximumf %165, %166 : vector<8x1xf32>
    %168 = vector.broadcast %159 : vector<8x1xf32> to vector<8x256xf32>
    %169 = arith.subf %148, %168 : vector<8x256xf32>
    %cst_45 = arith.constant 9.99999974E-6 : f32
    %170 = vector.broadcast %cst_45 : f32 to vector<8x1xf32>
    %171 = arith.addf %167, %170 : vector<8x1xf32>
    %172 = math.rsqrt %171 : vector<8x1xf32>
    %173 = arith.mulf %172, %149 : vector<8x1xf32>
    %174 = vector.broadcast %173 : vector<8x1xf32> to vector<8x256xf32>
    %175 = arith.mulf %169, %174 : vector<8x256xf32>
    %176 = vector.broadcast %150 : vector<8x1xf32> to vector<8x256xf32>
    %177 = arith.addf %175, %176 : vector<8x256xf32>
    %178 = arith.addf %177, %0 : vector<8x256xf32>
    %cst_46 = arith.constant 0.000000e+00 : f32
    %179 = vector.broadcast %cst_46 : f32 to vector<8x256xf32>
    %180 = arith.maximumf %178, %179 : vector<8x256xf32>
    %c0_47 = arith.constant 0 : index
    %c0_48 = arith.constant 0 : index
    %181 = vector.load %arg2[%c0_47, %c0_48] : memref<8x256xf32, #tpu.memory_space<vmem>>, vector<8x256xf32>
    tpu.vector_store %arg2[%c0_47, %c0_48], %180 {strides = array<i32>} : memref<8x256xf32, #tpu.memory_space<vmem>>, vector<8x256xf32>,
    return
  }
}

</mosaic_0001>

<llo_original>
// kernel: tiny_event_adaptor.1
$region0: #{tiny_event_adaptor.1}
  #allocation0 [shape = 'u32[]', space=smem, size = 0x4, offset = 0x4, fixed_abs, tag = 'smem constant byte address 0x4 - core index']
  #allocation1 [shape = 'u32[144,128]{1,0:T(1,128)}', space=vmem, size = 0x12000, scoped, tag = 'internal scratch']
  %s0 = inlined_call_operand.vmem [shape: f32[8,256], index: 0, kind: input, shape index: {}]
  %s1 = inlined_call_operand.vmem [shape: f32[8,21], index: 1, kind: input, shape index: {}]
  %s2 = inlined_call_operand.vmem [shape: f32[8,256], index: 2, kind: output, shape index: {}]
  %s3 = sld [smem:[#allocation0]]
  $region18: #{tiny_event_adaptor.1} parent=0
    _
  %s5 = ssub.s32 1, %s3
  %s6 = scalar_select 0, %s5, %s3
  // Predicated region
  $region2: #{tiny_event_adaptor.1} parent=0 // pred_check
    _
  $region3: #{tiny_event_adaptor.1} parent=0 // pred_check_branch
    %8 = sbr.rel (0) target = $region5
  $region4: #{tiny_event_adaptor.1} parent=0 // pred_region
    _
  $region5: #{tiny_event_adaptor.1} parent=0 // pred_fallthru
    _
  // Predicated region
  $region6: #{tiny_event_adaptor.1} parent=0 // pred_check
    _
  $region7: #{tiny_event_adaptor.1} parent=0 // pred_check_branch
    %10 = sbr.rel (0) target = $region9
  $region8: #{tiny_event_adaptor.1} parent=0 // pred_region
    _
  $region9: #{tiny_event_adaptor.1} parent=0 // pred_fallthru
    _
  %v11 = vld [vmem:[%s0] sm:$0xff]
  %v12 = vld [vmem:[%s0 + $0x8] sm:$0xff]
  %v13 = vlaneseq
  %v14 = vand.u32 %v13, 127
  %v15 = vadd.s32 %v14, 128
  %v16 = vand.u32 %v14, 15
  %v17 = vand.u32 %v15, 15
  %vm18 = vcmp.ne.s32.totalorder %v16, 15
  %vm19 = vcmp.ne.s32.totalorder %v17, 15
  %v20 = vsel %vm18, 1, 0
  %v21 = vsel %vm19, 1, 0
  %vm22 = vcmp.eq.s32.totalorder %v20, 1
  %vm23 = vcmp.eq.s32.totalorder %v21, 1
  %v24 = vsel %vm22, %v11, 0.0
  %v25 = vsel %vm23, %v12, 0.0
  %vm26 = vcmp.ne.s32.totalorder %v16, 0
  %vm27 = vcmp.ne.s32.totalorder %v17, 0
  %v28 = vsel %vm26, 1, 0
  %v29 = vsel %vm27, 1, 0
  %vm30 = vcmp.eq.s32.totalorder %v28, 1
  %vm31 = vcmp.eq.s32.totalorder %v29, 1
  %v32 = vsel %vm30, %v11, 0.0
  %v33 = vsel %vm31, %v12, 0.0
  %vm34 = vcmp.ge.s32.totalorder %v14, 16
  %vm35 = vcmp.ge.s32.totalorder %v15, 16
  %vm36 = vcmp.lt.s32.totalorder %v14, 240
  %vm37 = vcmp.lt.s32.totalorder %v15, 240
  %38 = vrot.lane.b32.xlu0 %v24, 17
  %v39 = vpop.permute.xlu0 %38
  %40 = vrot.lane.b32.xlu0 %v25, 17
  %v41 = vpop.permute.xlu0 %40
  %vm42 = vcmp.lt.s32.totalorder %v14, 17
  %v43 = vsel %vm42, %v39, %v41
  %v44 = vsel %vm42, %v41, %v39
  %v45 = vld [vmem:[%s1] sm:$0xff]
  %47 = vset.pattern.permute.xlu0 0
  %48 = vperm.xlu0 %47, %v45
  %v49 = vpop.permute.xlu0 %48
  %v51 = vmul.f32 %v44, %v49
  %v52 = vmul.f32 %v43, %v49
  %53 = vrot.lane.b32.xlu0 %v11, 16
  %v54 = vpop.permute.xlu0 %53
  %55 = vrot.lane.b32.xlu0 %v12, 16
  %v56 = vpop.permute.xlu0 %55
  %vm57 = vcmp.lt.s32.totalorder %v14, 16
  %v58 = vsel %vm57, %v54, %v56
  %v59 = vsel %vm57, %v56, %v54
  %60 = vset.pattern.permute.xlu0 1
  %61 = vperm.xlu0 %60, %v45
  %v62 = vpop.permute.xlu0 %61
  %v64 = vmul.f32 %v59, %v62
  %v65 = vmul.f32 %v58, %v62
  %v66 = vadd.f32 %v51, %v64
  %v67 = vadd.f32 %v52, %v65
  %68 = vrot.lane.b32.xlu0 %v32, 15
  %v69 = vpop.permute.xlu0 %68
  %70 = vrot.lane.b32.xlu0 %v33, 15
  %v71 = vpop.permute.xlu0 %70
  %vm72 = vcmp.lt.s32.totalorder %v14, 15
  %v73 = vsel %vm72, %v69, %v71
  %v74 = vsel %vm72, %v71, %v69
  %75 = vset.pattern.permute.xlu0 2
  %76 = vperm.xlu0 %75, %v45
  %v77 = vpop.permute.xlu0 %76
  %v79 = vmul.f32 %v74, %v77
  %v80 = vmul.f32 %v73, %v77
  %v81 = vadd.f32 %v66, %v79
  %v82 = vadd.f32 %v67, %v80
  %v83 = vsel %vm34, 1, 0
  %v84 = vsel %vm35, 1, 0
  %vm85 = vcmp.eq.s32.totalorder %v83, 1
  %vm86 = vcmp.eq.s32.totalorder %v84, 1
  %v87 = vsel %vm85, %v81, 0.0
  %v88 = vsel %vm86, %v82, 0.0
  %89 = vrot.lane.b32.xlu0 %v24, 1
  %v90 = vpop.permute.xlu0 %89
  %91 = vrot.lane.b32.xlu0 %v25, 1
  %v92 = vpop.permute.xlu0 %91
  %vm93 = vcmp.lt.s32.totalorder %v14, 1
  %v94 = vsel %vm93, %v90, %v92
  %v95 = vsel %vm93, %v92, %v90
  %96 = vset.pattern.permute.xlu0 3
  %97 = vperm.xlu0 %96, %v45
  %v98 = vpop.permute.xlu0 %97
  %v100 = vmul.f32 %v95, %v98
  %v101 = vmul.f32 %v94, %v98
  %102 = vset.pattern.permute.xlu0 4
  %103 = vperm.xlu0 %102, %v45
  %v104 = vpop.permute.xlu0 %103
  %v106 = vmul.f32 %v11, %v104
  %v107 = vmul.f32 %v12, %v104
  %v108 = vadd.f32 %v100, %v106
  %v109 = vadd.f32 %v101, %v107
  %110 = vrot.lane.b32.xlu0 %v32, 127
  %v111 = vpop.permute.xlu0 %110
  %112 = vrot.lane.b32.xlu0 %v33, 127
  %v113 = vpop.permute.xlu0 %112
  %vm114 = vcmp.lt.s32.totalorder %v14, 127
  %v115 = vsel %vm114, %v111, %v113
  %v116 = vsel %vm114, %v113, %v111
  %117 = vset.pattern.permute.xlu0 5
  %118 = vperm.xlu0 %117, %v45
  %v119 = vpop.permute.xlu0 %118
  %v121 = vmul.f32 %v115, %v119
  %v122 = vmul.f32 %v116, %v119
  %v123 = vadd.f32 %v108, %v121
  %v124 = vadd.f32 %v109, %v122
  %v125 = vadd.f32 %v87, %v123
  %v126 = vadd.f32 %v88, %v124
  %127 = vrot.lane.b32.xlu0 %v24, 113
  %v128 = vpop.permute.xlu0 %127
  %129 = vrot.lane.b32.xlu0 %v25, 113
  %v130 = vpop.permute.xlu0 %129
  %vm131 = vcmp.lt.s32.totalorder %v14, 113
  %v132 = vsel %vm131, %v128, %v130
  %v133 = vsel %vm131, %v130, %v128
  %134 = vset.pattern.permute.xlu0 6
  %135 = vperm.xlu0 %134, %v45
  %v136 = vpop.permute.xlu0 %135
  %v138 = vmul.f32 %v132, %v136
  %v139 = vmul.f32 %v133, %v136
  %140 = vrot.lane.b32.xlu0 %v11, 112
  %v141 = vpop.permute.xlu0 %140
  %142 = vrot.lane.b32.xlu0 %v12, 112
  %v143 = vpop.permute.xlu0 %142
  %vm144 = vcmp.lt.s32.totalorder %v14, 112
  %v145 = vsel %vm144, %v141, %v143
  %v146 = vsel %vm144, %v143, %v141
  %147 = vset.pattern.permute.xlu0 7
  %148 = vperm.xlu0 %147, %v45
  %v149 = vpop.permute.xlu0 %148
  %v151 = vmul.f32 %v145, %v149
  %v152 = vmul.f32 %v146, %v149
  %v153 = vadd.f32 %v138, %v151
  %v154 = vadd.f32 %v139, %v152
  %155 = vrot.lane.b32.xlu0 %v32, 111
  %v156 = vpop.permute.xlu0 %155
  %157 = vrot.lane.b32.xlu0 %v33, 111
  %v158 = vpop.permute.xlu0 %157
  %vm159 = vcmp.lt.s32.totalorder %v14, 111
  %v160 = vsel %vm159, %v156, %v158
  %v161 = vsel %vm159, %v158, %v156
  %162 = vset.pattern.permute.xlu0 8
  %163 = vperm.xlu0 %162, %v45
  %v164 = vpop.permute.xlu0 %163
  %v166 = vmul.f32 %v160, %v164
  %v167 = vmul.f32 %v161, %v164
  %v168 = vadd.f32 %v153, %v166
  %v169 = vadd.f32 %v154, %v167
  %v170 = vsel %vm36, 1, 0
  %v171 = vsel %vm37, 1, 0
  %vm172 = vcmp.eq.s32.totalorder %v170, 1
  %vm173 = vcmp.eq.s32.totalorder %v171, 1
  %v174 = vsel %vm172, %v168, 0.0
  %v175 = vsel %vm173, %v169, 0.0
  %v176 = vadd.f32 %v125, %v174
  %v177 = vadd.f32 %v126, %v175
  %v178 = vmul.f32 %v176, %v176
  %v179 = vmul.f32 %v177, %v177
  %v180 = vrot.slane %v176, 4
  %v181 = vrot.slane %v177, 4
  %v182 = vadd.f32 %v176, %v180
  %v183 = vadd.f32 %v177, %v181
  %v184 = vrot.slane %v178, 4
  %v185 = vrot.slane %v179, 4
  %v186 = vadd.f32 %v178, %v184
  %v187 = vadd.f32 %v179, %v185
  %v188 = vadd.f32 %v182, %v183
  %189 = vadd.xlane.f32.xlu0 %v188
  %v190 = vpop.xlane.xlu0 %189
  %v191 = vmul.f32 %v190, 0.001953125
  %v192 = vadd.f32 %v186, %v187
  %193 = vadd.xlane.f32.xlu0 %v192
  %v194 = vpop.xlane.xlu0 %193
  %v195 = vmul.f32 %v194, 0.001953125
  %v196 = vmul.f32 %v191, %v191
  %v197 = vsub.f32 %v195, %v196
  %v198 = vmax.f32 %v197, 0.0
  %v199 = vsub.f32 %v176, %v191
  %v200 = vsub.f32 %v177, %v191
  %v201 = vadd.f32 %v198, 1e-05
  %v202 = vrsqrt.pop %v201
  %v203 = vmul.f32 %v202, %v45
  %205 = vset.pattern.permute.xlu0 17
  %206 = vperm.xlu0 %205, %v203
  %v207 = vpop.permute.xlu0 %206
  %v209 = vmul.f32 %v199, %v207
  %v210 = vmul.f32 %v200, %v207
  %211 = vset.pattern.permute.xlu0 18
  %212 = vperm.xlu0 %211, %v45
  %v213 = vpop.permute.xlu0 %212
  %v215 = vadd.f32 %v209, %v213
  %v216 = vadd.f32 %v210, %v213
  %v217 = vmax.f32 %v215, 0.0
  %v218 = vmax.f32 %v216, 0.0
  %v219 = vlaneseq
  %v220 = vshrl.u32 %v219, 7
  %v221 = vsub.s32 0, %v220
  %v222 = vrot.slane %v217, %v221
  %v223 = vlaneseq
  %v224 = vshrl.u32 %v223, 7
  %v225 = vsub.s32 0, %v224
  %v226 = vrot.slane %v218, %v225
  %227 = vset.pattern.permute.xlu0 9
  %228 = vperm.xlu0 %227, %v45
  %v229 = vpop.permute.xlu0 %228
  %v231 = vmul.f32 %v222, %v229
  %v232 = vmul.f32 %v226, %v229
  %v233 = vlaneseq
  %v234 = vshrl.u32 %v233, 7
  %v235 = vsub.s32 1, %v234
  %v236 = vrot.slane %v217, %v235
  %v237 = vlaneseq
  %v238 = vshrl.u32 %v237, 7
  %v239 = vsub.s32 1, %v238
  %v240 = vrot.slane %v218, %v239
  %241 = vset.pattern.permute.xlu0 10
  %242 = vperm.xlu0 %241, %v45
  %v243 = vpop.permute.xlu0 %242
  %v245 = vmul.f32 %v236, %v243
  %v246 = vmul.f32 %v240, %v243
  %v247 = vadd.f32 %v231, %v245
  %v248 = vadd.f32 %v232, %v246
  %v249 = vlaneseq
  %v250 = vshrl.u32 %v249, 7
  %v251 = vsub.s32 2, %v250
  %v252 = vrot.slane %v217, %v251
  %v253 = vlaneseq
  %v254 = vshrl.u32 %v253, 7
  %v255 = vsub.s32 2, %v254
  %v256 = vrot.slane %v218, %v255
  %257 = vset.pattern.permute.xlu0 11
  %258 = vperm.xlu0 %257, %v45
  %v259 = vpop.permute.xlu0 %258
  %v261 = vmul.f32 %v252, %v259
  %v262 = vmul.f32 %v256, %v259
  %v263 = vadd.f32 %v247, %v261
  %v264 = vadd.f32 %v248, %v262
  %v265 = vlaneseq
  %v266 = vshrl.u32 %v265, 7
  %v267 = vsub.s32 3, %v266
  %v268 = vrot.slane %v217, %v267
  %v269 = vlaneseq
  %v270 = vshrl.u32 %v269, 7
  %v271 = vsub.s32 3, %v270
  %v272 = vrot.slane %v218, %v271
  %273 = vset.pattern.permute.xlu0 12
  %274 = vperm.xlu0 %273, %v45
  %v275 = vpop.permute.xlu0 %274
  %v277 = vmul.f32 %v268, %v275
  %v278 = vmul.f32 %v272, %v275
  %v279 = vadd.f32 %v263, %v277
  %v280 = vadd.f32 %v264, %v278
  %v281 = vlaneseq
  %v282 = vshrl.u32 %v281, 7
  %v283 = vsub.s32 4, %v282
  %v284 = vrot.slane %v217, %v283
  %v285 = vlaneseq
  %v286 = vshrl.u32 %v285, 7
  %v287 = vsub.s32 4, %v286
  %v288 = vrot.slane %v218, %v287
  %289 = vset.pattern.permute.xlu0 13
  %290 = vperm.xlu0 %289, %v45
  %v291 = vpop.permute.xlu0 %290
  %v293 = vmul.f32 %v284, %v291
  %v294 = vmul.f32 %v288, %v291
  %v295 = vadd.f32 %v279, %v293
  %v296 = vadd.f32 %v280, %v294
  %v297 = vlaneseq
  %v298 = vshrl.u32 %v297, 7
  %v299 = vsub.s32 5, %v298
  %v300 = vrot.slane %v217, %v299
  %v301 = vlaneseq
  %v302 = vshrl.u32 %v301, 7
  %v303 = vsub.s32 5, %v302
  %v304 = vrot.slane %v218, %v303
  %305 = vset.pattern.permute.xlu0 14
  %306 = vperm.xlu0 %305, %v45
  %v307 = vpop.permute.xlu0 %306
  %v309 = vmul.f32 %v300, %v307
  %v310 = vmul.f32 %v304, %v307
  %v311 = vadd.f32 %v295, %v309
  %v312 = vadd.f32 %v296, %v310
  %v313 = vlaneseq
  %v314 = vshrl.u32 %v313, 7
  %v315 = vsub.s32 6, %v314
  %v316 = vrot.slane %v217, %v315
  %v317 = vlaneseq
  %v318 = vshrl.u32 %v317, 7
  %v319 = vsub.s32 6, %v318
  %v320 = vrot.slane %v218, %v319
  %321 = vset.pattern.permute.xlu0 15
  %322 = vperm.xlu0 %321, %v45
  %v323 = vpop.permute.xlu0 %322
  %v325 = vmul.f32 %v316, %v323
  %v326 = vmul.f32 %v320, %v323
  %v327 = vadd.f32 %v311, %v325
  %v328 = vadd.f32 %v312, %v326
  %v329 = vlaneseq
  %v330 = vshrl.u32 %v329, 7
  %v331 = vsub.s32 7, %v330
  %v332 = vrot.slane %v217, %v331
  %v333 = vlaneseq
  %v334 = vshrl.u32 %v333, 7
  %v335 = vsub.s32 7, %v334
  %v336 = vrot.slane %v218, %v335
  %337 = vset.pattern.permute.xlu0 16
  %338 = vperm.xlu0 %337, %v45
  %v339 = vpop.permute.xlu0 %338
  %v341 = vmul.f32 %v332, %v339
  %v342 = vmul.f32 %v336, %v339
  %v343 = vadd.f32 %v327, %v341
  %v344 = vadd.f32 %v328, %v342
  %v345 = vmul.f32 %v343, %v343
  %v346 = vmul.f32 %v344, %v344
  %v347 = vrot.slane %v343, 4
  %v348 = vrot.slane %v344, 4
  %v349 = vadd.f32 %v343, %v347
  %v350 = vadd.f32 %v344, %v348
  %v351 = vrot.slane %v345, 4
  %v352 = vrot.slane %v346, 4
  %v353 = vadd.f32 %v345, %v351
  %v354 = vadd.f32 %v346, %v352
  %v355 = vadd.f32 %v349, %v350
  %356 = vadd.xlane.f32.xlu0 %v355
  %v357 = vpop.xlane.xlu0 %356
  %v358 = vmul.f32 %v357, 0.001953125
  %v359 = vadd.f32 %v353, %v354
  %360 = vadd.xlane.f32.xlu0 %v359
  %v361 = vpop.xlane.xlu0 %360
  %v362 = vmul.f32 %v361, 0.001953125
  %v363 = vmul.f32 %v358, %v358
  %v364 = vsub.f32 %v362, %v363
  %v365 = vmax.f32 %v364, 0.0
  %v366 = vsub.f32 %v343, %v358
  %v367 = vsub.f32 %v344, %v358
  %v368 = vadd.f32 %v365, 1e-05
  %v369 = vrsqrt.pop %v368
  %v370 = vmul.f32 %v369, %v45
  %372 = vset.pattern.permute.xlu0 19
  %373 = vperm.xlu0 %372, %v370
  %v374 = vpop.permute.xlu0 %373
  %v376 = vmul.f32 %v366, %v374
  %v377 = vmul.f32 %v367, %v374
  %378 = vset.pattern.permute.xlu0 20
  %379 = vperm.xlu0 %378, %v45
  %v380 = vpop.permute.xlu0 %379
  %v382 = vadd.f32 %v376, %v380
  %v383 = vadd.f32 %v377, %v380
  %v384 = vadd.f32 %v382, %v11
  %v385 = vadd.f32 %v383, %v12
  %v386 = vmax.f32 %v384, 0.0
  %v387 = vmax.f32 %v385, 0.0
  %388 = vst [vmem:[%s2] sm:$0xff] %v386
  %389 = vst [vmem:[%s2 + $0x8] sm:$0xff] %v387
  // Predicated region
  $region10: #{tiny_event_adaptor.1} parent=0 // pred_check
    _
  $region11: #{tiny_event_adaptor.1} parent=0 // pred_check_branch
    %391 = sbr.rel (0) target = $region13
  $region12: #{tiny_event_adaptor.1} parent=0 // pred_region
    _
  $region13: #{tiny_event_adaptor.1} parent=0 // pred_fallthru
    _
  // Predicated region
  $region14: #{tiny_event_adaptor.1} parent=0 // pred_check
    _
  $region15: #{tiny_event_adaptor.1} parent=0 // pred_check_branch
    %393 = sbr.rel (0) target = $region17
  $region16: #{tiny_event_adaptor.1} parent=0 // pred_region
    _
  $region17: #{tiny_event_adaptor.1} parent=0 // pred_fallthru
    _

</llo_original>
